<compile_context>
chip_gen: v6e
topology: v6e:2x2x1
jax: 0.10.0
libtpu: 0.0.40
codegen_flags: <defaults>
</compile_context>

<pallas_src>
import math

import jax
import jax.numpy as jnp
from jax.experimental import pallas as pl
from jax.experimental.pallas import tpu as pltpu

_LANE = 128
_PACKED_MAX_D = 128                 # packed-lane MXU path for D <= 128
_VMEM_BUDGET = 24 * 1024 * 1024     # conservative: fits v7x (64 MiB/TC) w/ headroom
_VMEM_LIMIT = 48 * 1024 * 1024      # raise the 16/32 MiB scoped defaults


def _round_up(x, m):
    return ((x + m - 1) // m) * m


def _round_down_mult(x, m):
    return max(m, (x // m) * m)


# ----------------------------------------------------------------------------
# Kernels
# ----------------------------------------------------------------------------
def _logreg_packed_kernel(x_ref, w2_ref, b_ref, o_ref):
    # x_ref : (TMr, 128*D) native dtype; each row packs 128 consecutive batch rows
    # w2_ref: (128*D, 128) same dtype; w2[k*D + d, k] = w[d], zero elsewhere
    # b_ref : (1,) f32 in SMEM
    # o_ref : (TMr, 128) f32, lane-dense in the batch dimension
    z = jnp.dot(x_ref[...], w2_ref[...], preferred_element_type=jnp.float32)
    o_ref[...] = jax.nn.sigmoid(z + b_ref[0])


def _logreg_wide_kernel(x_ref, w_ref, b_ref, o_ref):
    # x_ref: (TM, D) native dtype; w_ref: (D, 128) with column 0 = w, rest zero
    # o_ref: (TM, 1) f32  (narrow store; negligible vs D*4 bytes/row of input)
    z = jnp.dot(x_ref[...], w_ref[...], preferred_element_type=jnp.float32)
    o_ref[...] = jax.nn.sigmoid(z[:, 0:1] + b_ref[0])


# ----------------------------------------------------------------------------
# Wrappers
# ----------------------------------------------------------------------------
def _forward_packed(x, w_vec, b_arr):
    B, D = x.shape
    item = x.dtype.itemsize
    packed_d = _LANE * D                      # always a multiple of 128

    # Pad the batch to a multiple of 128 only when ragged (<= 127 extra rows).
    # TODO(synk): a prefix-kernel + plain-JAX-tail split would avoid even this
    # copy for ragged B; typical batches are 128-aligned so keep it simple.
    b_pad = _round_up(B, _LANE)
    if b_pad != B:
        x = jnp.pad(x, ((0, b_pad - B), (0, 0)))
    g = b_pad // _LANE
    xp = x.reshape(g, packed_d)               # free row-major reshape (no copy)

    # Block-structured weight: (xp @ w2)[i, k] == sum_d x[i*128 + k, d] * w[d].
    w2 = jnp.kron(jnp.eye(_LANE, dtype=w_vec.dtype), w_vec.reshape(D, 1))

    # Tile sizing: as many packed rows as the VMEM budget allows (double-
    # buffered x, resident w2, f32 output), a multiple of 8; cap so large
    # inputs still get several grid steps (v7x has 2 TCs), but never shrink a
    # block below ~1 MiB so per-step overhead stays amortised.
    w2_bytes = packed_d * _LANE * item
    block_budget = max((_VMEM_BUDGET - 2 * w2_bytes) // 3, 1 << 19)
    tmr = _round_down_mult(block_budget // (packed_d * item), 8)
    rows_for_8_steps = max(8, _round_up(pl.cdiv(g, 8), 8))
    min_rows_1mb = _round_down_mult((1 << 20) // (packed_d * item), 8)
    tmr = min(tmr, max(rows_for_8_steps, min_rows_1mb))
    if tmr >= g:
        tmr = g                               # single full-extent block
    grid = (pl.cdiv(g, tmr),)

    out = pl.pallas_call(
        _logreg_packed_kernel,
        out_shape=jax.ShapeDtypeStruct((g, _LANE), jnp.float32),
        grid_spec=pl.GridSpec(
            grid=grid,
            in_specs=[
                pl.BlockSpec((tmr, packed_d), lambda i: (i, 0)),
                pl.BlockSpec((packed_d, _LANE), lambda i: (0, 0)),
                pl.BlockSpec(memory_space=pltpu.MemorySpace.SMEM),
            ],
            out_specs=pl.BlockSpec((tmr, _LANE), lambda i: (i, 0)),
        ),
        compiler_params=pltpu.CompilerParams(
            dimension_semantics=("parallel",),
            vmem_limit_bytes=_VMEM_LIMIT,
        ),
        cost_estimate=pl.CostEstimate(
            flops=2 * g * packed_d * _LANE,
            transcendentals=g * _LANE,
            bytes_accessed=g * packed_d * item + w2_bytes + g * _LANE * 4,
        ),
    )(xp, w2, b_arr)

    # Lane-dense (g, 128) slab -> (B, 1); 4 bytes/row of layout plumbing.
    return out.reshape(b_pad, 1)[:B]


def _forward_wide(x, w_vec, b_arr):
    B, D = x.shape
    item = x.dtype.itemsize
    padded_d = _round_up(D, _LANE)            # lane-padded VMEM width

    w_pad = jnp.zeros((D, _LANE), dtype=x.dtype).at[:, 0].set(w_vec)

    w_bytes = padded_d * _LANE * item
    block_budget = max((_VMEM_BUDGET - 2 * w_bytes) // 3, 1 << 19)
    tm = _round_down_mult(block_budget // (padded_d * item), 8)
    rows_for_8_steps = max(8, _round_up(pl.cdiv(B, 8), 8))
    min_rows_1mb = _round_down_mult((1 << 20) // (padded_d * item), 8)
    tm = min(tm, max(rows_for_8_steps, min_rows_1mb))
    if tm >= B:
        tm = B
    grid = (pl.cdiv(B, tm),)

    return pl.pallas_call(
        _logreg_wide_kernel,
        out_shape=jax.ShapeDtypeStruct((B, 1), jnp.float32),
        grid_spec=pl.GridSpec(
            grid=grid,
            in_specs=[
                pl.BlockSpec((tm, D), lambda i: (i, 0)),
                pl.BlockSpec((D, _LANE), lambda i: (0, 0)),
                pl.BlockSpec(memory_space=pltpu.MemorySpace.SMEM),
            ],
            out_specs=pl.BlockSpec((tm, 1), lambda i: (i, 0)),
        ),
        compiler_params=pltpu.CompilerParams(
            dimension_semantics=("parallel",),
            vmem_limit_bytes=_VMEM_LIMIT,
        ),
        cost_estimate=pl.CostEstimate(
            flops=2 * B * D * _LANE,
            transcendentals=B,
            bytes_accessed=B * D * item + D * _LANE * item + B * 4,
        ),
    )(x, w_pad, b_arr)


def logistic_regression_forward(x, weight, bias):
    """sigmoid(x @ weight.T + bias); x:(B,D), weight:(1,D), bias:(1,) -> (B,1) f32."""
    _, D = x.shape
    b_arr = bias.reshape(1).astype(jnp.float32)
    w_vec = weight.reshape(D).astype(x.dtype)   # MXU consumes native dtype; f32 accum
    if D <= _PACKED_MAX_D:
        return _forward_packed(x, w_vec, b_arr)
    return _forward_wide(x, w_vec, b_arr)


class LogisticRegressionModel:
    """Mirror of the PyTorch module (nn.Linear(input_dim, 1) followed by sigmoid)."""

    def __init__(self, input_dim, key):
        kw, kb = jax.random.split(key)
        # nn.Linear default init: U(-1/sqrt(in), 1/sqrt(in)) for weight and bias.
        bound = 1.0 / math.sqrt(input_dim)
        self.weight = jax.random.uniform(kw, (1, input_dim), jnp.float32, -bound, bound)
        self.bias = jax.random.uniform(kb, (1,), jnp.float32, -bound, bound)

    def __call__(self, x):
        return logistic_regression_forward(x, self.weight, self.bias)


if __name__ == "__main__":
    key = jax.random.PRNGKey(0)
    k_x, k_p = jax.random.split(key)

    batch = 256        # multiple of 128 -> zero-copy packed path
    input_dim = 15     # Framingham-style feature count

    model = LogisticRegressionModel(input_dim, k_p)
    x = jax.random.normal(k_x, (batch, input_dim), jnp.float32)

    # Snap demo inputs/params to bf16-representable values so the comparison
    # below is insensitive to how many bf16 passes the MXU uses for f32 dots
    # (kernel and reference then agree to f32 accumulation rounding).
    snap = lambda a: a.astype(jnp.bfloat16).astype(jnp.float32)
    x = snap(x)
    model.weight = snap(model.weight)
    model.bias = snap(model.bias)

    out = jax.block_until_ready(model(x))

    # Reference: same math as torch.sigmoid(self.linear(x)).
    ref = jax.nn.sigmoid(x @ model.weight.T + model.bias)
    assert out.shape == (batch, 1)
    assert jnp.allclose(out, ref, atol=1e-4, rtol=1e-4)

    print("KERNEL_OK")
</pallas_src>

<mosaic_0001>
module attributes {stable_mosaic.version = 11 : i64} {
  func.func @_logreg_packed_kernel(%arg0: i32, %arg1: memref<2x1920xf32, #tpu.memory_space<vmem>>, %arg2: memref<1920x128xf32, #tpu.memory_space<vmem>>, %arg3: memref<1xf32, #tpu.memory_space<smem>>, %arg4: memref<2x128xf32, #tpu.memory_space<vmem>>) attributes {dimension_semantics = [#tpu.dimension_semantics<parallel>], iteration_bounds = array<i64: 1>, scalar_prefetch = 0 : i64, scratch_operands = 0 : i64, tpu.core_type = #tpu.core_type<tc>, window_params = [{transform_indices = @transform_0, window_bounds = array<i64: 2, 1920>}, {pipeline_mode = #tpu.pipeline_mode<synchronous>, transform_indices = @transform_1, window_bounds = array<i64: 1920, 128>}, {transform_indices = @transform_2, window_bounds = array<i64: 1>}, {transform_indices = @transform_3, window_bounds = array<i64: 2, 128>}]} {
    %c0 = arith.constant 0 : index
    %c0_0 = arith.constant 0 : index
    %0 = vector.load %arg1[%c0, %c0_0] : memref<2x1920xf32, #tpu.memory_space<vmem>>, vector<2x1920xf32>
    %c0_1 = arith.constant 0 : index
    %c0_2 = arith.constant 0 : index
    %1 = vector.load %arg2[%c0_1, %c0_2] : memref<1920x128xf32, #tpu.memory_space<vmem>>, vector<1920x128xf32>
    %cst = arith.constant dense<0.000000e+00> : vector<2x128xf32>
    %2 = tpu.matmul %0, %1, %cst {dimension_numbers = #tpu.dot_dimension_numbers<[1], [0], [0], [1], [0, 0, 1, 1], [], []>} : vector<2x1920xf32>, vector<1920x128xf32>, vector<2x128xf32> -> vector<2x128xf32>
    %c0_3 = arith.constant 0 : index
    %3 = memref.load %arg3[%c0_3] : memref<1xf32, #tpu.memory_space<smem>>
    %4 = vector.broadcast %3 : f32 to vector<2x128xf32>
    %5 = arith.addf %2, %4 : vector<2x128xf32>
    %6 = arith.negf %5 : vector<2x128xf32>
    %7 = math.exp %6 : vector<2x128xf32>
    %cst_4 = arith.constant 1.000000e+00 : f32
    %8 = vector.broadcast %cst_4 : f32 to vector<2x128xf32>
    %9 = arith.addf %8, %7 : vector<2x128xf32>
    %10 = arith.divf %8, %9 : vector<2x128xf32>
    %c0_5 = arith.constant 0 : index
    %c0_6 = arith.constant 0 : index
    %11 = vector.load %arg4[%c0_5, %c0_6] : memref<2x128xf32, #tpu.memory_space<vmem>>, vector<2x128xf32>
    tpu.vector_store %arg4[%c0_5, %c0_6], %10 {strides = array<i32>} : memref<2x128xf32, #tpu.memory_space<vmem>>, vector<2x128xf32>,
    return
  }
  func.func @transform_0(%arg0: i32) -> (i32, i32) {
    %c0_i32 = arith.constant 0 : i32
    %c0_i32_0 = arith.constant 0 : i32
    return %arg0, %c0_i32 : i32, i32
  }
  func.func @transform_1(%arg0: i32) -> (i32, i32) {
    %c0_i32 = arith.constant 0 : i32
    %c0_i32_0 = arith.constant 0 : i32
    %c0_i32_1 = arith.constant 0 : i32
    return %c0_i32, %c0_i32_0 : i32, i32
  }
  func.func @transform_2(%arg0: i32) -> i32 {
    %c0_i32 = arith.constant 0 : i32
    %c0_i32_0 = arith.constant 0 : i32
    return %c0_i32 : i32
  }
  func.func @transform_3(%arg0: i32) -> (i32, i32) {
    %c0_i32 = arith.constant 0 : i32
    %c0_i32_0 = arith.constant 0 : i32
    return %arg0, %c0_i32 : i32, i32
  }
}

</mosaic_0001>

<llo_original>
// kernel: tpu_custom_call.1
$region0: #{tpu_custom_call.1}
  #allocation0 [shape = 'u32[]', space=smem, size = 0x4, offset = 0x4, fixed_abs, tag = 'smem constant byte address 0x4 - core index']
  #allocation1 [shape = 'u32[144,128]{1,0:T(1,128)}', space=vmem, size = 0x12000, scoped, tag = 'internal scratch']
  #allocation2 [shape = 'f32[1]{0:T(128)S(6)}', space=smem, size = 0x200, scoped, tag = 'scoped memory for tpu_custom_call.1']
  %s0 = inlined_call_operand.hbm [shape: f32[2,1920], index: 0, kind: input, shape index: {}]
  %s1 = inlined_call_operand.hbm [shape: f32[1920,128], index: 1, kind: input, shape index: {}]
  %s2 = inlined_call_operand.<no memory space> [shape: f32[1], index: 2, kind: input, shape index: {}]
  %s3 = inlined_call_operand.hbm [shape: f32[2,128], index: 3, kind: output, shape index: {}]
  %s4 = sld [smem:[#allocation0]]
  $region30: #{tpu_custom_call.1} parent=0
    _
  %s6 = ssub.s32 1, %s4
  %s7 = scalar_select 0, %s6, %s4
  %8 = sst [smem:[#allocation2]] %s2
  $region1: #{tpu_custom_call.1} parent=0
    #allocation3 [shape = 'u8[15360]{0}', space=vmem, size = 0x3c00, scoped, tag = 'input window, operand 0, single buffered']
    #allocation4 [shape = 's32[1]{0}', space=sflag, size = 0x4, scoped, tag = 'scoped memory for tpu_custom_call.1']
    #allocation5 [shape = 's32[1]{0}', space=sflag, size = 0x4, scoped, tag = 'scoped memory for tpu_custom_call.1']
    #allocation6 [shape = 'u8[983040]{0}', space=vmem, size = 0xf0000, scoped, tag = 'input window, operand 1, single buffered']
    #allocation7 [shape = 's32[1]{0}', space=sflag, size = 0x4, scoped, tag = 'scoped memory for tpu_custom_call.1']
    #allocation8 [shape = 'u8[1024]{0}', space=vmem, size = 0x400, scoped, tag = 'output window, operand 0, single buffered']
    %9 = vsyncpa [#allocation4], 0
    %10 = vsyncpa [#allocation7], 0
    %11 = vsyncpa [#allocation5], 0
    // Predicated region
    $region2: #{tpu_custom_call.1} parent=1 // pred_check
      _
    $region3: #{tpu_custom_call.1} parent=1 // pred_check_branch
      %13 = sbr.rel (0) target = $region5
    $region4: #{tpu_custom_call.1} parent=1 // pred_region
      %s15 = ssub.s32 480, 480
      %16 = vsyncadd [#allocation4], %s15
      %s18 = sshll.u32 [#allocation3], 4
      %s19 = int_to_ptr.vmem [resolvable:$true] %s18
      %21 = dma.hbm_to_vmem [thread:$0]  %s0, 480, %s19, [#allocation4]
    $region5: #{tpu_custom_call.1} parent=1 // pred_fallthru
      _
    // Predicated region
    $region6: #{tpu_custom_call.1} parent=1 // pred_check
      _
    $region7: #{tpu_custom_call.1} parent=1 // pred_check_branch
      %23 = sbr.rel (0) target = $region9
    $region8: #{tpu_custom_call.1} parent=1 // pred_region
      %s25 = ssub.s32 30720, 30720
      %26 = vsyncadd [#allocation7], %s25
      %s27 = sshll.u32 [#allocation6], 4
      %s28 = int_to_ptr.vmem [resolvable:$true] %s27
      %33 = dma.hbm_to_vmem [thread:$0]  %s1, 30720, %s28, [#allocation7], 128, 128, 8
    $region9: #{tpu_custom_call.1} parent=1 // pred_fallthru
      _
    // Predicated region
    $region10: #{tpu_custom_call.1} parent=1 // pred_check
      _
    $region11: #{tpu_custom_call.1} parent=1 // pred_check_branch
      %35 = sbr.rel (0) target = $region13
    $region12: #{tpu_custom_call.1} parent=1 // pred_region
      _
    $region13: #{tpu_custom_call.1} parent=1 // pred_fallthru
      _
    // Predicated region
    $region14: #{tpu_custom_call.1} parent=1 // pred_check
      _
    $region15: #{tpu_custom_call.1} parent=1 // pred_check_branch
      %37 = sbr.rel (0) target = $region17
    $region16: #{tpu_custom_call.1} parent=1 // pred_region
      %38 = dma.done [#allocation4], 480
    $region17: #{tpu_custom_call.1} parent=1 // pred_fallthru
      _
    // Predicated region
    $region18: #{tpu_custom_call.1} parent=1 // pred_check
      _
    $region19: #{tpu_custom_call.1} parent=1 // pred_check_branch
      %40 = sbr.rel (0) target = $region21
    $region20: #{tpu_custom_call.1} parent=1 // pred_region
      %41 = dma.done [#allocation7], 30720
    $region21: #{tpu_custom_call.1} parent=1 // pred_fallthru
      _
    %v42 = vld [vmem:[#allocation3] sm:$0xff]
    %v43 = vld [vmem:[#allocation3 + $0x8] sm:$0xff]
    %v44 = vld [vmem:[#allocation3 + $0x10] sm:$0xff]
    %v45 = vld [vmem:[#allocation3 + $0x18] sm:$0x3f]
    %v46 = vld [vmem:[#allocation6] sm:$0xff]
    %v47 = vld [vmem:[#allocation6 + $0x8] sm:$0xff]
    %v48 = vld [vmem:[#allocation6 + $0x10] sm:$0xff]
    %v49 = vld [vmem:[#allocation6 + $0x18] sm:$0xff]
    %v50 = vld [vmem:[#allocation6 + $0x20] sm:$0xff]
    %v51 = vld [vmem:[#allocation6 + $0x28] sm:$0xff]
    %v52 = vld [vmem:[#allocation6 + $0x30] sm:$0xff]
    %v53 = vld [vmem:[#allocation6 + $0x38] sm:$0xff]
    %v54 = vld [vmem:[#allocation6 + $0x40] sm:$0xff]
    %v55 = vld [vmem:[#allocation6 + $0x48] sm:$0xff]
    %v56 = vld [vmem:[#allocation6 + $0x50] sm:$0xff]
    %v57 = vld [vmem:[#allocation6 + $0x58] sm:$0xff]
    %v58 = vld [vmem:[#allocation6 + $0x60] sm:$0xff]
    %v59 = vld [vmem:[#allocation6 + $0x68] sm:$0xff]
    %v60 = vld [vmem:[#allocation6 + $0x70] sm:$0xff]
    %v61 = vld [vmem:[#allocation6 + $0x78] sm:$0xff]
    %v62 = vld [vmem:[#allocation6 + $0x80] sm:$0xff]
    %v63 = vld [vmem:[#allocation6 + $0x88] sm:$0xff]
    %v64 = vld [vmem:[#allocation6 + $0x90] sm:$0xff]
    %v65 = vld [vmem:[#allocation6 + $0x98] sm:$0xff]
    %v66 = vld [vmem:[#allocation6 + $0xa0] sm:$0xff]
    %v67 = vld [vmem:[#allocation6 + $0xa8] sm:$0xff]
    %v68 = vld [vmem:[#allocation6 + $0xb0] sm:$0xff]
    %v69 = vld [vmem:[#allocation6 + $0xb8] sm:$0xff]
    %v70 = vld [vmem:[#allocation6 + $0xc0] sm:$0xff]
    %v71 = vld [vmem:[#allocation6 + $0xc8] sm:$0xff]
    %v72 = vld [vmem:[#allocation6 + $0xd0] sm:$0xff]
    %v73 = vld [vmem:[#allocation6 + $0xd8] sm:$0xff]
    %v74 = vld [vmem:[#allocation6 + $0xe0] sm:$0xff]
    %v75 = vld [vmem:[#allocation6 + $0xe8] sm:$0xff]
    %v76 = vld [vmem:[#allocation6 + $0xf0] sm:$0xff]
    %v77 = vld [vmem:[#allocation6 + $0xf8] sm:$0xff]
    %v78 = vld [vmem:[#allocation6 + $0x100] sm:$0xff]
    %v79 = vld [vmem:[#allocation6 + $0x108] sm:$0xff]
    %v80 = vld [vmem:[#allocation6 + $0x110] sm:$0xff]
    %v81 = vld [vmem:[#allocation6 + $0x118] sm:$0xff]
    %v82 = vld [vmem:[#allocation6 + $0x120] sm:$0xff]
    %v83 = vld [vmem:[#allocation6 + $0x128] sm:$0xff]
    %v84 = vld [vmem:[#allocation6 + $0x130] sm:$0xff]
    %v85 = vld [vmem:[#allocation6 + $0x138] sm:$0xff]
    %v86 = vld [vmem:[#allocation6 + $0x140] sm:$0xff]
    %v87 = vld [vmem:[#allocation6 + $0x148] sm:$0xff]
    %v88 = vld [vmem:[#allocation6 + $0x150] sm:$0xff]
    %v89 = vld [vmem:[#allocation6 + $0x158] sm:$0xff]
    %v90 = vld [vmem:[#allocation6 + $0x160] sm:$0xff]
    %v91 = vld [vmem:[#allocation6 + $0x168] sm:$0xff]
    %v92 = vld [vmem:[#allocation6 + $0x170] sm:$0xff]
    %v93 = vld [vmem:[#allocation6 + $0x178] sm:$0xff]
    %v94 = vld [vmem:[#allocation6 + $0x180] sm:$0xff]
    %v95 = vld [vmem:[#allocation6 + $0x188] sm:$0xff]
    %v96 = vld [vmem:[#allocation6 + $0x190] sm:$0xff]
    %v97 = vld [vmem:[#allocation6 + $0x198] sm:$0xff]
    %v98 = vld [vmem:[#allocation6 + $0x1a0] sm:$0xff]
    %v99 = vld [vmem:[#allocation6 + $0x1a8] sm:$0xff]
    %v100 = vld [vmem:[#allocation6 + $0x1b0] sm:$0xff]
    %v101 = vld [vmem:[#allocation6 + $0x1b8] sm:$0xff]
    %v102 = vld [vmem:[#allocation6 + $0x1c0] sm:$0xff]
    %v103 = vld [vmem:[#allocation6 + $0x1c8] sm:$0xff]
    %v104 = vld [vmem:[#allocation6 + $0x1d0] sm:$0xff]
    %v105 = vld [vmem:[#allocation6 + $0x1d8] sm:$0xff]
    %v106 = vld [vmem:[#allocation6 + $0x1e0] sm:$0xff]
    %v107 = vld [vmem:[#allocation6 + $0x1e8] sm:$0xff]
    %v108 = vld [vmem:[#allocation6 + $0x1f0] sm:$0xff]
    %v109 = vld [vmem:[#allocation6 + $0x1f8] sm:$0xff]
    %v110 = vld [vmem:[#allocation6 + $0x200] sm:$0xff]
    %v111 = vld [vmem:[#allocation6 + $0x208] sm:$0xff]
    %v112 = vld [vmem:[#allocation6 + $0x210] sm:$0xff]
    %v113 = vld [vmem:[#allocation6 + $0x218] sm:$0xff]
    %v114 = vld [vmem:[#allocation6 + $0x220] sm:$0xff]
    %v115 = vld [vmem:[#allocation6 + $0x228] sm:$0xff]
    %v116 = vld [vmem:[#allocation6 + $0x230] sm:$0xff]
    %v117 = vld [vmem:[#allocation6 + $0x238] sm:$0xff]
    %v118 = vld [vmem:[#allocation6 + $0x240] sm:$0xff]
    %v119 = vld [vmem:[#allocation6 + $0x248] sm:$0xff]
    %v120 = vld [vmem:[#allocation6 + $0x250] sm:$0xff]
    %v121 = vld [vmem:[#allocation6 + $0x258] sm:$0xff]
    %v122 = vld [vmem:[#allocation6 + $0x260] sm:$0xff]
    %v123 = vld [vmem:[#allocation6 + $0x268] sm:$0xff]
    %v124 = vld [vmem:[#allocation6 + $0x270] sm:$0xff]
    %v125 = vld [vmem:[#allocation6 + $0x278] sm:$0xff]
    %v126 = vld [vmem:[#allocation6 + $0x280] sm:$0xff]
    %v127 = vld [vmem:[#allocation6 + $0x288] sm:$0xff]
    %v128 = vld [vmem:[#allocation6 + $0x290] sm:$0xff]
    %v129 = vld [vmem:[#allocation6 + $0x298] sm:$0xff]
    %v130 = vld [vmem:[#allocation6 + $0x2a0] sm:$0xff]
    %v131 = vld [vmem:[#allocation6 + $0x2a8] sm:$0xff]
    %v132 = vld [vmem:[#allocation6 + $0x2b0] sm:$0xff]
    %v133 = vld [vmem:[#allocation6 + $0x2b8] sm:$0xff]
    %v134 = vld [vmem:[#allocation6 + $0x2c0] sm:$0xff]
    %v135 = vld [vmem:[#allocation6 + $0x2c8] sm:$0xff]
    %v136 = vld [vmem:[#allocation6 + $0x2d0] sm:$0xff]
    %v137 = vld [vmem:[#allocation6 + $0x2d8] sm:$0xff]
    %v138 = vld [vmem:[#allocation6 + $0x2e0] sm:$0xff]
    %v139 = vld [vmem:[#allocation6 + $0x2e8] sm:$0xff]
    %v140 = vld [vmem:[#allocation6 + $0x2f0] sm:$0xff]
    %v141 = vld [vmem:[#allocation6 + $0x2f8] sm:$0xff]
    %v142 = vld [vmem:[#allocation6 + $0x300] sm:$0xff]
    %v143 = vld [vmem:[#allocation6 + $0x308] sm:$0xff]
    %v144 = vld [vmem:[#allocation6 + $0x310] sm:$0xff]
    %v145 = vld [vmem:[#allocation6 + $0x318] sm:$0xff]
    %v146 = vld [vmem:[#allocation6 + $0x320] sm:$0xff]
    %v147 = vld [vmem:[#allocation6 + $0x328] sm:$0xff]
    %v148 = vld [vmem:[#allocation6 + $0x330] sm:$0xff]
    %v149 = vld [vmem:[#allocation6 + $0x338] sm:$0xff]
    %v150 = vld [vmem:[#allocation6 + $0x340] sm:$0xff]
    %v151 = vld [vmem:[#allocation6 + $0x348] sm:$0xff]
    %v152 = vld [vmem:[#allocation6 + $0x350] sm:$0xff]
    %v153 = vld [vmem:[#allocation6 + $0x358] sm:$0xff]
    %v154 = vld [vmem:[#allocation6 + $0x360] sm:$0xff]
    %v155 = vld [vmem:[#allocation6 + $0x368] sm:$0xff]
    %v156 = vld [vmem:[#allocation6 + $0x370] sm:$0xff]
    %v157 = vld [vmem:[#allocation6 + $0x378] sm:$0xff]
    %v158 = vld [vmem:[#allocation6 + $0x380] sm:$0xff]
    %v159 = vld [vmem:[#allocation6 + $0x388] sm:$0xff]
    %v160 = vld [vmem:[#allocation6 + $0x390] sm:$0xff]
    %v161 = vld [vmem:[#allocation6 + $0x398] sm:$0xff]
    %v162 = vld [vmem:[#allocation6 + $0x3a0] sm:$0xff]
    %v163 = vld [vmem:[#allocation6 + $0x3a8] sm:$0xff]
    %v164 = vld [vmem:[#allocation6 + $0x3b0] sm:$0xff]
    %v165 = vld [vmem:[#allocation6 + $0x3b8] sm:$0xff]
    %v166 = vld [vmem:[#allocation6 + $0x3c0] sm:$0xff]
    %v167 = vld [vmem:[#allocation6 + $0x3c8] sm:$0xff]
    %v168 = vld [vmem:[#allocation6 + $0x3d0] sm:$0xff]
    %v169 = vld [vmem:[#allocation6 + $0x3d8] sm:$0xff]
    %v170 = vld [vmem:[#allocation6 + $0x3e0] sm:$0xff]
    %v171 = vld [vmem:[#allocation6 + $0x3e8] sm:$0xff]
    %v172 = vld [vmem:[#allocation6 + $0x3f0] sm:$0xff]
    %v173 = vld [vmem:[#allocation6 + $0x3f8] sm:$0xff]
    %v174 = vld [vmem:[#allocation6 + $0x400] sm:$0xff]
    %v175 = vld [vmem:[#allocation6 + $0x408] sm:$0xff]
    %v176 = vld [vmem:[#allocation6 + $0x410] sm:$0xff]
    %v177 = vld [vmem:[#allocation6 + $0x418] sm:$0xff]
    %v178 = vld [vmem:[#allocation6 + $0x420] sm:$0xff]
    %v179 = vld [vmem:[#allocation6 + $0x428] sm:$0xff]
    %v180 = vld [vmem:[#allocation6 + $0x430] sm:$0xff]
    %v181 = vld [vmem:[#allocation6 + $0x438] sm:$0xff]
    %v182 = vld [vmem:[#allocation6 + $0x440] sm:$0xff]
    %v183 = vld [vmem:[#allocation6 + $0x448] sm:$0xff]
    %v184 = vld [vmem:[#allocation6 + $0x450] sm:$0xff]
    %v185 = vld [vmem:[#allocation6 + $0x458] sm:$0xff]
    %v186 = vld [vmem:[#allocation6 + $0x460] sm:$0xff]
    %v187 = vld [vmem:[#allocation6 + $0x468] sm:$0xff]
    %v188 = vld [vmem:[#allocation6 + $0x470] sm:$0xff]
    %v189 = vld [vmem:[#allocation6 + $0x478] sm:$0xff]
    %v190 = vld [vmem:[#allocation6 + $0x480] sm:$0xff]
    %v191 = vld [vmem:[#allocation6 + $0x488] sm:$0xff]
    %v192 = vld [vmem:[#allocation6 + $0x490] sm:$0xff]
    %v193 = vld [vmem:[#allocation6 + $0x498] sm:$0xff]
    %v194 = vld [vmem:[#allocation6 + $0x4a0] sm:$0xff]
    %v195 = vld [vmem:[#allocation6 + $0x4a8] sm:$0xff]
    %v196 = vld [vmem:[#allocation6 + $0x4b0] sm:$0xff]
    %v197 = vld [vmem:[#allocation6 + $0x4b8] sm:$0xff]
    %v198 = vld [vmem:[#allocation6 + $0x4c0] sm:$0xff]
    %v199 = vld [vmem:[#allocation6 + $0x4c8] sm:$0xff]
    %v200 = vld [vmem:[#allocation6 + $0x4d0] sm:$0xff]
    %v201 = vld [vmem:[#allocation6 + $0x4d8] sm:$0xff]
    %v202 = vld [vmem:[#allocation6 + $0x4e0] sm:$0xff]
    %v203 = vld [vmem:[#allocation6 + $0x4e8] sm:$0xff]
    %v204 = vld [vmem:[#allocation6 + $0x4f0] sm:$0xff]
    %v205 = vld [vmem:[#allocation6 + $0x4f8] sm:$0xff]
    %v206 = vld [vmem:[#allocation6 + $0x500] sm:$0xff]
    %v207 = vld [vmem:[#allocation6 + $0x508] sm:$0xff]
    %v208 = vld [vmem:[#allocation6 + $0x510] sm:$0xff]
    %v209 = vld [vmem:[#allocation6 + $0x518] sm:$0xff]
    %v210 = vld [vmem:[#allocation6 + $0x520] sm:$0xff]
    %v211 = vld [vmem:[#allocation6 + $0x528] sm:$0xff]
    %v212 = vld [vmem:[#allocation6 + $0x530] sm:$0xff]
    %v213 = vld [vmem:[#allocation6 + $0x538] sm:$0xff]
    %v214 = vld [vmem:[#allocation6 + $0x540] sm:$0xff]
    %v215 = vld [vmem:[#allocation6 + $0x548] sm:$0xff]
    %v216 = vld [vmem:[#allocation6 + $0x550] sm:$0xff]
    %v217 = vld [vmem:[#allocation6 + $0x558] sm:$0xff]
    %v218 = vld [vmem:[#allocation6 + $0x560] sm:$0xff]
    %v219 = vld [vmem:[#allocation6 + $0x568] sm:$0xff]
    %v220 = vld [vmem:[#allocation6 + $0x570] sm:$0xff]
    %v221 = vld [vmem:[#allocation6 + $0x578] sm:$0xff]
    %v222 = vld [vmem:[#allocation6 + $0x580] sm:$0xff]
    %v223 = vld [vmem:[#allocation6 + $0x588] sm:$0xff]
    %v224 = vld [vmem:[#allocation6 + $0x590] sm:$0xff]
    %v225 = vld [vmem:[#allocation6 + $0x598] sm:$0xff]
    %v226 = vld [vmem:[#allocation6 + $0x5a0] sm:$0xff]
    %v227 = vld [vmem:[#allocation6 + $0x5a8] sm:$0xff]
    %v228 = vld [vmem:[#allocation6 + $0x5b0] sm:$0xff]
    %v229 = vld [vmem:[#allocation6 + $0x5b8] sm:$0xff]
    %v230 = vld [vmem:[#allocation6 + $0x5c0] sm:$0xff]
    %v231 = vld [vmem:[#allocation6 + $0x5c8] sm:$0xff]
    %v232 = vld [vmem:[#allocation6 + $0x5d0] sm:$0xff]
    %v233 = vld [vmem:[#allocation6 + $0x5d8] sm:$0xff]
    %v234 = vld [vmem:[#allocation6 + $0x5e0] sm:$0xff]
    %v235 = vld [vmem:[#allocation6 + $0x5e8] sm:$0xff]
    %v236 = vld [vmem:[#allocation6 + $0x5f0] sm:$0xff]
    %v237 = vld [vmem:[#allocation6 + $0x5f8] sm:$0xff]
    %v238 = vld [vmem:[#allocation6 + $0x600] sm:$0xff]
    %v239 = vld [vmem:[#allocation6 + $0x608] sm:$0xff]
    %v240 = vld [vmem:[#allocation6 + $0x610] sm:$0xff]
    %v241 = vld [vmem:[#allocation6 + $0x618] sm:$0xff]
    %v242 = vld [vmem:[#allocation6 + $0x620] sm:$0xff]
    %v243 = vld [vmem:[#allocation6 + $0x628] sm:$0xff]
    %v244 = vld [vmem:[#allocation6 + $0x630] sm:$0xff]
    %v245 = vld [vmem:[#allocation6 + $0x638] sm:$0xff]
    %v246 = vld [vmem:[#allocation6 + $0x640] sm:$0xff]
    %v247 = vld [vmem:[#allocation6 + $0x648] sm:$0xff]
    %v248 = vld [vmem:[#allocation6 + $0x650] sm:$0xff]
    %v249 = vld [vmem:[#allocation6 + $0x658] sm:$0xff]
    %v250 = vld [vmem:[#allocation6 + $0x660] sm:$0xff]
    %v251 = vld [vmem:[#allocation6 + $0x668] sm:$0xff]
    %v252 = vld [vmem:[#allocation6 + $0x670] sm:$0xff]
    %v253 = vld [vmem:[#allocation6 + $0x678] sm:$0xff]
    %v254 = vld [vmem:[#allocation6 + $0x680] sm:$0xff]
    %v255 = vld [vmem:[#allocation6 + $0x688] sm:$0xff]
    %v256 = vld [vmem:[#allocation6 + $0x690] sm:$0xff]
    %v257 = vld [vmem:[#allocation6 + $0x698] sm:$0xff]
    %v258 = vld [vmem:[#allocation6 + $0x6a0] sm:$0xff]
    %v259 = vld [vmem:[#allocation6 + $0x6a8] sm:$0xff]
    %v260 = vld [vmem:[#allocation6 + $0x6b0] sm:$0xff]
    %v261 = vld [vmem:[#allocation6 + $0x6b8] sm:$0xff]
    %v262 = vld [vmem:[#allocation6 + $0x6c0] sm:$0xff]
    %v263 = vld [vmem:[#allocation6 + $0x6c8] sm:$0xff]
    %v264 = vld [vmem:[#allocation6 + $0x6d0] sm:$0xff]
    %v265 = vld [vmem:[#allocation6 + $0x6d8] sm:$0xff]
    %v266 = vld [vmem:[#allocation6 + $0x6e0] sm:$0xff]
    %v267 = vld [vmem:[#allocation6 + $0x6e8] sm:$0xff]
    %v268 = vld [vmem:[#allocation6 + $0x6f0] sm:$0xff]
    %v269 = vld [vmem:[#allocation6 + $0x6f8] sm:$0xff]
    %v270 = vld [vmem:[#allocation6 + $0x700] sm:$0xff]
    %v271 = vld [vmem:[#allocation6 + $0x708] sm:$0xff]
    %v272 = vld [vmem:[#allocation6 + $0x710] sm:$0xff]
    %v273 = vld [vmem:[#allocation6 + $0x718] sm:$0xff]
    %v274 = vld [vmem:[#allocation6 + $0x720] sm:$0xff]
    %v275 = vld [vmem:[#allocation6 + $0x728] sm:$0xff]
    %v276 = vld [vmem:[#allocation6 + $0x730] sm:$0xff]
    %v277 = vld [vmem:[#allocation6 + $0x738] sm:$0xff]
    %v278 = vld [vmem:[#allocation6 + $0x740] sm:$0xff]
    %v279 = vld [vmem:[#allocation6 + $0x748] sm:$0xff]
    %v280 = vld [vmem:[#allocation6 + $0x750] sm:$0xff]
    %v281 = vld [vmem:[#allocation6 + $0x758] sm:$0xff]
    %v282 = vld [vmem:[#allocation6 + $0x760] sm:$0xff]
    %v283 = vld [vmem:[#allocation6 + $0x768] sm:$0xff]
    %v284 = vld [vmem:[#allocation6 + $0x770] sm:$0xff]
    %v285 = vld [vmem:[#allocation6 + $0x778] sm:$0xff]
    %s286 = sld [smem:[#allocation2]]
    %v287 = vstv %s286
    %v292 = vcombine.high %v42, %v42
    %v294 = vunpack.c.l.s4 1983009808
    %v295 = vunpack.c.0.s8 %v294
    %v296 = vlaneseq
    %v297 = vshrl.u32 %v296, 7
    %v298 = vsub.s32 %v295, %v297
    %v299 = vrot.slane %v42, %v298
    %v301 = vunpack.c.l.s4 1983009808
    %v302 = vunpack.c.0.s8 %v301
    %v303 = vlaneseq
    %v304 = vshrl.u32 %v303, 7
    %v305 = vsub.s32 %v302, %v304
    %v306 = vrot.slane %v292, %v305
    %v307 = vcombine.high %v299, %v299
    %v308 = vcombine.high %v306, %v306
    %v309 = vcombine.high %v43, %v43
    %v311 = vunpack.c.l.s4 1983009808
    %v312 = vunpack.c.0.s8 %v311
    %v313 = vlaneseq
    %v314 = vshrl.u32 %v313, 7
    %v315 = vsub.s32 %v312, %v314
    %v316 = vrot.slane %v43, %v315
    %v318 = vunpack.c.l.s4 1983009808
    %v319 = vunpack.c.0.s8 %v318
    %v320 = vlaneseq
    %v321 = vshrl.u32 %v320, 7
    %v322 = vsub.s32 %v319, %v321
    %v323 = vrot.slane %v309, %v322
    %v324 = vcombine.high %v316, %v316
    %v325 = vcombine.high %v323, %v323
    %v326 = vcombine.high %v44, %v44
    %v328 = vunpack.c.l.s4 1983009808
    %v329 = vunpack.c.0.s8 %v328
    %v330 = vlaneseq
    %v331 = vshrl.u32 %v330, 7
    %v332 = vsub.s32 %v329, %v331
    %v333 = vrot.slane %v44, %v332
    %v335 = vunpack.c.l.s4 1983009808
    %v336 = vunpack.c.0.s8 %v335
    %v337 = vlaneseq
    %v338 = vshrl.u32 %v337, 7
    %v339 = vsub.s32 %v336, %v338
    %v340 = vrot.slane %v326, %v339
    %v341 = vcombine.high %v333, %v333
    %v342 = vcombine.high %v340, %v340
    %v343 = vcombine.high %v45, %v45
    %v345 = vunpack.c.l.s4 1983009808
    %v346 = vunpack.c.0.s8 %v345
    %v347 = vlaneseq
    %v348 = vshrl.u32 %v347, 7
    %v349 = vsub.s32 %v346, %v348
    %v350 = vrot.slane %v45, %v349
    %v352 = vunpack.c.l.s4 1983009808
    %v353 = vunpack.c.0.s8 %v352
    %v354 = vlaneseq
    %v355 = vshrl.u32 %v354, 7
    %v356 = vsub.s32 %v353, %v355
    %v357 = vrot.slane %v343, %v356
    %v358 = vcombine.high %v350, %v350
    %374 = vmatprep.subr.mxu0 0.0
    %375 = vmatpush1.msra.mxu0 %v61
    %376 = vmatprep.subr.mxu0 0.0
    %377 = vmatpush1.msra.mxu0 %v60
    %378 = vmatprep.subr.mxu0 0.0
    %379 = vmatpush1.msra.mxu0 %v59
    %380 = vmatprep.subr.mxu0 0.0
    %381 = vmatpush1.msra.mxu0 %v58
    %382 = vmatprep.subr.mxu0 0.0
    %383 = vmatpush1.msra.mxu0 %v57
    %384 = vmatprep.subr.mxu0 0.0
    %385 = vmatpush1.msra.mxu0 %v56
    %386 = vmatprep.subr.mxu0 0.0
    %387 = vmatpush1.msra.mxu0 %v55
    %388 = vmatprep.subr.mxu0 0.0
    %389 = vmatpush1.msra.mxu0 %v54
    %390 = vmatprep.subr.mxu0 0.0
    %391 = vmatpush1.msra.mxu0 %v53
    %392 = vmatprep.subr.mxu0 0.0
    %393 = vmatpush1.msra.mxu0 %v52
    %394 = vmatprep.subr.mxu0 0.0
    %395 = vmatpush1.msra.mxu0 %v51
    %396 = vmatprep.subr.mxu0 0.0
    %397 = vmatpush1.msra.mxu0 %v50
    %398 = vmatprep.subr.mxu0 0.0
    %399 = vmatpush1.msra.mxu0 %v49
    %400 = vmatprep.subr.mxu0 0.0
    %401 = vmatpush1.msra.mxu0 %v48
    %402 = vmatprep.subr.mxu0 0.0
    %403 = vmatpush1.msra.mxu0 %v47
    %404 = vmatprep.subr.mxu0 0.0
    %405 = vmatpush1.msra.mxu0 %v46
    %406 = vmatprep.subr.mxu0 0.0
    %407 = vmatpush2.msra.mxu0 %v77
    %408 = vmatprep.subr.mxu0 0.0
    %409 = vmatpush2.msra.mxu0 %v76
    %410 = vmatprep.subr.mxu0 0.0
    %411 = vmatpush2.msra.mxu0 %v75
    %412 = vmatprep.subr.mxu0 0.0
    %413 = vmatpush2.msra.mxu0 %v74
    %414 = vmatprep.subr.mxu0 0.0
    %415 = vmatpush2.msra.mxu0 %v73
    %416 = vmatprep.subr.mxu0 0.0
    %417 = vmatpush2.msra.mxu0 %v72
    %418 = vmatprep.subr.mxu0 0.0
    %419 = vmatpush2.msra.mxu0 %v71
    %420 = vmatprep.subr.mxu0 0.0
    %421 = vmatpush2.msra.mxu0 %v70
    %422 = vmatprep.subr.mxu0 0.0
    %423 = vmatpush2.msra.mxu0 %v69
    %424 = vmatprep.subr.mxu0 0.0
    %425 = vmatpush2.msra.mxu0 %v68
    %426 = vmatprep.subr.mxu0 0.0
    %427 = vmatpush2.msra.mxu0 %v67
    %428 = vmatprep.subr.mxu0 0.0
    %429 = vmatpush2.msra.mxu0 %v66
    %430 = vmatprep.subr.mxu0 0.0
    %431 = vmatpush2.msra.mxu0 %v65
    %432 = vmatprep.subr.mxu0 0.0
    %433 = vmatpush2.msra.mxu0 %v64
    %434 = vmatprep.subr.mxu0 0.0
    %435 = vmatpush2.msra.mxu0 %v63
    %436 = vmatprep.subr.mxu0 0.0
    %437 = vmatpush2.msra.mxu0 %v62
    %438 = vmatprep.mubr.f32.mxu0 %v307
    %439 = vmatmul.mubr.f32.gmra.mxu0 %v299
    %v440 = vpop.f32.mrf.mxu0
    %v441 = vadd.f32 %v287, %v440
    %v442 = vpop.f32.mrf.mxu0
    %443 = vdwg.mxu0
    %444 = vmatprep.subr.mxu0 0.0
    %445 = vmatpush1.msra.mxu0 %v93
    %446 = vmatprep.subr.mxu0 0.0
    %447 = vmatpush1.msra.mxu0 %v92
    %448 = vmatprep.subr.mxu0 0.0
    %449 = vmatpush1.msra.mxu0 %v91
    %450 = vmatprep.subr.mxu0 0.0
    %451 = vmatpush1.msra.mxu0 %v90
    %452 = vmatprep.subr.mxu0 0.0
    %453 = vmatpush1.msra.mxu0 %v89
    %454 = vmatprep.subr.mxu0 0.0
    %455 = vmatpush1.msra.mxu0 %v88
    %456 = vmatprep.subr.mxu0 0.0
    %457 = vmatpush1.msra.mxu0 %v87
    %458 = vmatprep.subr.mxu0 0.0
    %459 = vmatpush1.msra.mxu0 %v86
    %460 = vmatprep.subr.mxu0 0.0
    %461 = vmatpush1.msra.mxu0 %v85
    %462 = vmatprep.subr.mxu0 0.0
    %463 = vmatpush1.msra.mxu0 %v84
    %464 = vmatprep.subr.mxu0 0.0
    %465 = vmatpush1.msra.mxu0 %v83
    %466 = vmatprep.subr.mxu0 0.0
    %467 = vmatpush1.msra.mxu0 %v82
    %468 = vmatprep.subr.mxu0 0.0
    %469 = vmatpush1.msra.mxu0 %v81
    %470 = vmatprep.subr.mxu0 0.0
    %471 = vmatpush1.msra.mxu0 %v80
    %472 = vmatprep.subr.mxu0 0.0
    %473 = vmatpush1.msra.mxu0 %v79
    %474 = vmatprep.subr.mxu0 0.0
    %475 = vmatpush1.msra.mxu0 %v78
    %476 = vmatprep.subr.mxu0 0.0
    %477 = vmatpush2.msra.mxu0 %v109
    %478 = vmatprep.subr.mxu0 0.0
    %479 = vmatpush2.msra.mxu0 %v108
    %480 = vmatprep.subr.mxu0 0.0
    %481 = vmatpush2.msra.mxu0 %v107
    %482 = vmatprep.subr.mxu0 0.0
    %483 = vmatpush2.msra.mxu0 %v106
    %484 = vmatprep.subr.mxu0 0.0
    %485 = vmatpush2.msra.mxu0 %v105
    %486 = vmatprep.subr.mxu0 0.0
    %487 = vmatpush2.msra.mxu0 %v104
    %488 = vmatprep.subr.mxu0 0.0
    %489 = vmatpush2.msra.mxu0 %v103
    %490 = vmatprep.subr.mxu0 0.0
    %491 = vmatpush2.msra.mxu0 %v102
    %492 = vmatprep.subr.mxu0 0.0
    %493 = vmatpush2.msra.mxu0 %v101
    %494 = vmatprep.subr.mxu0 0.0
    %495 = vmatpush2.msra.mxu0 %v100
    %496 = vmatprep.subr.mxu0 0.0
    %497 = vmatpush2.msra.mxu0 %v99
    %498 = vmatprep.subr.mxu0 0.0
    %499 = vmatpush2.msra.mxu0 %v98
    %500 = vmatprep.subr.mxu0 0.0
    %501 = vmatpush2.msra.mxu0 %v97
    %502 = vmatprep.subr.mxu0 0.0
    %503 = vmatpush2.msra.mxu0 %v96
    %504 = vmatprep.subr.mxu0 0.0
    %505 = vmatpush2.msra.mxu0 %v95
    %506 = vmatprep.subr.mxu0 0.0
    %507 = vmatpush2.msra.mxu0 %v94
    %508 = vmatprep.mubr.f32.mxu0 %v308
    %509 = vmatmul.mubr.f32.gmra.mxu0 %v306
    %v510 = vpop.f32.mrf.mxu0
    %v511 = vadd.f32 %v441, %v510
    %v512 = vpop.f32.mrf.mxu0
    %513 = vdwg.mxu0
    %514 = vmatprep.subr.mxu0 0.0
    %515 = vmatpush1.msra.mxu0 %v125
    %516 = vmatprep.subr.mxu0 0.0
    %517 = vmatpush1.msra.mxu0 %v124
    %518 = vmatprep.subr.mxu0 0.0
    %519 = vmatpush1.msra.mxu0 %v123
    %520 = vmatprep.subr.mxu0 0.0
    %521 = vmatpush1.msra.mxu0 %v122
    %522 = vmatprep.subr.mxu0 0.0
    %523 = vmatpush1.msra.mxu0 %v121
    %524 = vmatprep.subr.mxu0 0.0
    %525 = vmatpush1.msra.mxu0 %v120
    %526 = vmatprep.subr.mxu0 0.0
    %527 = vmatpush1.msra.mxu0 %v119
    %528 = vmatprep.subr.mxu0 0.0
    %529 = vmatpush1.msra.mxu0 %v118
    %530 = vmatprep.subr.mxu0 0.0
    %531 = vmatpush1.msra.mxu0 %v117
    %532 = vmatprep.subr.mxu0 0.0
    %533 = vmatpush1.msra.mxu0 %v116
    %534 = vmatprep.subr.mxu0 0.0
    %535 = vmatpush1.msra.mxu0 %v115
    %536 = vmatprep.subr.mxu0 0.0
    %537 = vmatpush1.msra.mxu0 %v114
    %538 = vmatprep.subr.mxu0 0.0
    %539 = vmatpush1.msra.mxu0 %v113
    %540 = vmatprep.subr.mxu0 0.0
    %541 = vmatpush1.msra.mxu0 %v112
    %542 = vmatprep.subr.mxu0 0.0
    %543 = vmatpush1.msra.mxu0 %v111
    %544 = vmatprep.subr.mxu0 0.0
    %545 = vmatpush1.msra.mxu0 %v110
    %546 = vmatprep.subr.mxu0 0.0
    %547 = vmatpush2.msra.mxu0 %v141
    %548 = vmatprep.subr.mxu0 0.0
    %549 = vmatpush2.msra.mxu0 %v140
    %550 = vmatprep.subr.mxu0 0.0
    %551 = vmatpush2.msra.mxu0 %v139
    %552 = vmatprep.subr.mxu0 0.0
    %553 = vmatpush2.msra.mxu0 %v138
    %554 = vmatprep.subr.mxu0 0.0
    %555 = vmatpush2.msra.mxu0 %v137
    %556 = vmatprep.subr.mxu0 0.0
    %557 = vmatpush2.msra.mxu0 %v136
    %558 = vmatprep.subr.mxu0 0.0
    %559 = vmatpush2.msra.mxu0 %v135
    %560 = vmatprep.subr.mxu0 0.0
    %561 = vmatpush2.msra.mxu0 %v134
    %562 = vmatprep.subr.mxu0 0.0
    %563 = vmatpush2.msra.mxu0 %v133
    %564 = vmatprep.subr.mxu0 0.0
    %565 = vmatpush2.msra.mxu0 %v132
    %566 = vmatprep.subr.mxu0 0.0
    %567 = vmatpush2.msra.mxu0 %v131
    %568 = vmatprep.subr.mxu0 0.0
    %569 = vmatpush2.msra.mxu0 %v130
    %570 = vmatprep.subr.mxu0 0.0
    %571 = vmatpush2.msra.mxu0 %v129
    %572 = vmatprep.subr.mxu0 0.0
    %573 = vmatpush2.msra.mxu0 %v128
    %574 = vmatprep.subr.mxu0 0.0
    %575 = vmatpush2.msra.mxu0 %v127
    %576 = vmatprep.subr.mxu0 0.0
    %577 = vmatpush2.msra.mxu0 %v126
    %578 = vmatprep.mubr.f32.mxu0 %v324
    %579 = vmatmul.mubr.f32.gmra.mxu0 %v316
    %v580 = vpop.f32.mrf.mxu0
    %v581 = vadd.f32 %v511, %v580
    %v582 = vpop.f32.mrf.mxu0
    %583 = vdwg.mxu0
    %584 = vmatprep.subr.mxu0 0.0
    %585 = vmatpush1.msra.mxu0 %v157
    %586 = vmatprep.subr.mxu0 0.0
    %587 = vmatpush1.msra.mxu0 %v156
    %588 = vmatprep.subr.mxu0 0.0
    %589 = vmatpush1.msra.mxu0 %v155
    %590 = vmatprep.subr.mxu0 0.0
    %591 = vmatpush1.msra.mxu0 %v154
    %592 = vmatprep.subr.mxu0 0.0
    %593 = vmatpush1.msra.mxu0 %v153
    %594 = vmatprep.subr.mxu0 0.0
    %595 = vmatpush1.msra.mxu0 %v152
    %596 = vmatprep.subr.mxu0 0.0
    %597 = vmatpush1.msra.mxu0 %v151
    %598 = vmatprep.subr.mxu0 0.0
    %599 = vmatpush1.msra.mxu0 %v150
    %600 = vmatprep.subr.mxu0 0.0
    %601 = vmatpush1.msra.mxu0 %v149
    %602 = vmatprep.subr.mxu0 0.0
    %603 = vmatpush1.msra.mxu0 %v148
    %604 = vmatprep.subr.mxu0 0.0
    %605 = vmatpush1.msra.mxu0 %v147
    %606 = vmatprep.subr.mxu0 0.0
    %607 = vmatpush1.msra.mxu0 %v146
    %608 = vmatprep.subr.mxu0 0.0
    %609 = vmatpush1.msra.mxu0 %v145
    %610 = vmatprep.subr.mxu0 0.0
    %611 = vmatpush1.msra.mxu0 %v144
    %612 = vmatprep.subr.mxu0 0.0
    %613 = vmatpush1.msra.mxu0 %v143
    %614 = vmatprep.subr.mxu0 0.0
    %615 = vmatpush1.msra.mxu0 %v142
    %616 = vmatprep.subr.mxu0 0.0
    %617 = vmatpush2.msra.mxu0 %v173
    %618 = vmatprep.subr.mxu0 0.0
    %619 = vmatpush2.msra.mxu0 %v172
    %620 = vmatprep.subr.mxu0 0.0
    %621 = vmatpush2.msra.mxu0 %v171
    %622 = vmatprep.subr.mxu0 0.0
    %623 = vmatpush2.msra.mxu0 %v170
    %624 = vmatprep.subr.mxu0 0.0
    %625 = vmatpush2.msra.mxu0 %v169
    %626 = vmatprep.subr.mxu0 0.0
    %627 = vmatpush2.msra.mxu0 %v168
    %628 = vmatprep.subr.mxu0 0.0
    %629 = vmatpush2.msra.mxu0 %v167
    %630 = vmatprep.subr.mxu0 0.0
    %631 = vmatpush2.msra.mxu0 %v166
    %632 = vmatprep.subr.mxu0 0.0
    %633 = vmatpush2.msra.mxu0 %v165
    %634 = vmatprep.subr.mxu0 0.0
    %635 = vmatpush2.msra.mxu0 %v164
    %636 = vmatprep.subr.mxu0 0.0
    %637 = vmatpush2.msra.mxu0 %v163
    %638 = vmatprep.subr.mxu0 0.0
    %639 = vmatpush2.msra.mxu0 %v162
    %640 = vmatprep.subr.mxu0 0.0
    %641 = vmatpush2.msra.mxu0 %v161
    %642 = vmatprep.subr.mxu0 0.0
    %643 = vmatpush2.msra.mxu0 %v160
    %644 = vmatprep.subr.mxu0 0.0
    %645 = vmatpush2.msra.mxu0 %v159
    %646 = vmatprep.subr.mxu0 0.0
    %647 = vmatpush2.msra.mxu0 %v158
    %648 = vmatprep.mubr.f32.mxu0 %v325
    %649 = vmatmul.mubr.f32.gmra.mxu0 %v323
    %v650 = vpop.f32.mrf.mxu0
    %v651 = vadd.f32 %v581, %v650
    %v652 = vpop.f32.mrf.mxu0
    %653 = vdwg.mxu0
    %654 = vmatprep.subr.mxu0 0.0
    %655 = vmatpush1.msra.mxu0 %v189
    %656 = vmatprep.subr.mxu0 0.0
    %657 = vmatpush1.msra.mxu0 %v188
    %658 = vmatprep.subr.mxu0 0.0
    %659 = vmatpush1.msra.mxu0 %v187
    %660 = vmatprep.subr.mxu0 0.0
    %661 = vmatpush1.msra.mxu0 %v186
    %662 = vmatprep.subr.mxu0 0.0
    %663 = vmatpush1.msra.mxu0 %v185
    %664 = vmatprep.subr.mxu0 0.0
    %665 = vmatpush1.msra.mxu0 %v184
    %666 = vmatprep.subr.mxu0 0.0
    %667 = vmatpush1.msra.mxu0 %v183
    %668 = vmatprep.subr.mxu0 0.0
    %669 = vmatpush1.msra.mxu0 %v182
    %670 = vmatprep.subr.mxu0 0.0
    %671 = vmatpush1.msra.mxu0 %v181
    %672 = vmatprep.subr.mxu0 0.0
    %673 = vmatpush1.msra.mxu0 %v180
    %674 = vmatprep.subr.mxu0 0.0
    %675 = vmatpush1.msra.mxu0 %v179
    %676 = vmatprep.subr.mxu0 0.0
    %677 = vmatpush1.msra.mxu0 %v178
    %678 = vmatprep.subr.mxu0 0.0
    %679 = vmatpush1.msra.mxu0 %v177
    %680 = vmatprep.subr.mxu0 0.0
    %681 = vmatpush1.msra.mxu0 %v176
    %682 = vmatprep.subr.mxu0 0.0
    %683 = vmatpush1.msra.mxu0 %v175
    %684 = vmatprep.subr.mxu0 0.0
    %685 = vmatpush1.msra.mxu0 %v174
    %686 = vmatprep.subr.mxu0 0.0
    %687 = vmatpush2.msra.mxu0 %v205
    %688 = vmatprep.subr.mxu0 0.0
    %689 = vmatpush2.msra.mxu0 %v204
    %690 = vmatprep.subr.mxu0 0.0
    %691 = vmatpush2.msra.mxu0 %v203
    %692 = vmatprep.subr.mxu0 0.0
    %693 = vmatpush2.msra.mxu0 %v202
    %694 = vmatprep.subr.mxu0 0.0
    %695 = vmatpush2.msra.mxu0 %v201
    %696 = vmatprep.subr.mxu0 0.0
    %697 = vmatpush2.msra.mxu0 %v200
    %698 = vmatprep.subr.mxu0 0.0
    %699 = vmatpush2.msra.mxu0 %v199
    %700 = vmatprep.subr.mxu0 0.0
    %701 = vmatpush2.msra.mxu0 %v198
    %702 = vmatprep.subr.mxu0 0.0
    %703 = vmatpush2.msra.mxu0 %v197
    %704 = vmatprep.subr.mxu0 0.0
    %705 = vmatpush2.msra.mxu0 %v196
    %706 = vmatprep.subr.mxu0 0.0
    %707 = vmatpush2.msra.mxu0 %v195
    %708 = vmatprep.subr.mxu0 0.0
    %709 = vmatpush2.msra.mxu0 %v194
    %710 = vmatprep.subr.mxu0 0.0
    %711 = vmatpush2.msra.mxu0 %v193
    %712 = vmatprep.subr.mxu0 0.0
    %713 = vmatpush2.msra.mxu0 %v192
    %714 = vmatprep.subr.mxu0 0.0
    %715 = vmatpush2.msra.mxu0 %v191
    %716 = vmatprep.subr.mxu0 0.0
    %717 = vmatpush2.msra.mxu0 %v190
    %718 = vmatprep.mubr.f32.mxu0 %v341
    %719 = vmatmul.mubr.f32.gmra.mxu0 %v333
    %v720 = vpop.f32.mrf.mxu0
    %v721 = vadd.f32 %v651, %v720
    %v722 = vpop.f32.mrf.mxu0
    %723 = vdwg.mxu0
    %724 = vmatprep.subr.mxu0 0.0
    %725 = vmatpush1.msra.mxu0 %v221
    %726 = vmatprep.subr.mxu0 0.0
    %727 = vmatpush1.msra.mxu0 %v220
    %728 = vmatprep.subr.mxu0 0.0
    %729 = vmatpush1.msra.mxu0 %v219
    %730 = vmatprep.subr.mxu0 0.0
    %731 = vmatpush1.msra.mxu0 %v218
    %732 = vmatprep.subr.mxu0 0.0
    %733 = vmatpush1.msra.mxu0 %v217
    %734 = vmatprep.subr.mxu0 0.0
    %735 = vmatpush1.msra.mxu0 %v216
    %736 = vmatprep.subr.mxu0 0.0
    %737 = vmatpush1.msra.mxu0 %v215
    %738 = vmatprep.subr.mxu0 0.0
    %739 = vmatpush1.msra.mxu0 %v214
    %740 = vmatprep.subr.mxu0 0.0
    %741 = vmatpush1.msra.mxu0 %v213
    %742 = vmatprep.subr.mxu0 0.0
    %743 = vmatpush1.msra.mxu0 %v212
    %744 = vmatprep.subr.mxu0 0.0
    %745 = vmatpush1.msra.mxu0 %v211
    %746 = vmatprep.subr.mxu0 0.0
    %747 = vmatpush1.msra.mxu0 %v210
    %748 = vmatprep.subr.mxu0 0.0
    %749 = vmatpush1.msra.mxu0 %v209
    %750 = vmatprep.subr.mxu0 0.0
    %751 = vmatpush1.msra.mxu0 %v208
    %752 = vmatprep.subr.mxu0 0.0
    %753 = vmatpush1.msra.mxu0 %v207
    %754 = vmatprep.subr.mxu0 0.0
    %755 = vmatpush1.msra.mxu0 %v206
    %756 = vmatprep.subr.mxu0 0.0
    %757 = vmatpush2.msra.mxu0 %v237
    %758 = vmatprep.subr.mxu0 0.0
    %759 = vmatpush2.msra.mxu0 %v236
    %760 = vmatprep.subr.mxu0 0.0
    %761 = vmatpush2.msra.mxu0 %v235
    %762 = vmatprep.subr.mxu0 0.0
    %763 = vmatpush2.msra.mxu0 %v234
    %764 = vmatprep.subr.mxu0 0.0
    %765 = vmatpush2.msra.mxu0 %v233
    %766 = vmatprep.subr.mxu0 0.0
    %767 = vmatpush2.msra.mxu0 %v232
    %768 = vmatprep.subr.mxu0 0.0
    %769 = vmatpush2.msra.mxu0 %v231
    %770 = vmatprep.subr.mxu0 0.0
    %771 = vmatpush2.msra.mxu0 %v230
    %772 = vmatprep.subr.mxu0 0.0
    %773 = vmatpush2.msra.mxu0 %v229
    %774 = vmatprep.subr.mxu0 0.0
    %775 = vmatpush2.msra.mxu0 %v228
    %776 = vmatprep.subr.mxu0 0.0
    %777 = vmatpush2.msra.mxu0 %v227
    %778 = vmatprep.subr.mxu0 0.0
    %779 = vmatpush2.msra.mxu0 %v226
    %780 = vmatprep.subr.mxu0 0.0
    %781 = vmatpush2.msra.mxu0 %v225
    %782 = vmatprep.subr.mxu0 0.0
    %783 = vmatpush2.msra.mxu0 %v224
    %784 = vmatprep.subr.mxu0 0.0
    %785 = vmatpush2.msra.mxu0 %v223
    %786 = vmatprep.subr.mxu0 0.0
    %787 = vmatpush2.msra.mxu0 %v222
    %788 = vmatprep.mubr.f32.mxu0 %v342
    %789 = vmatmul.mubr.f32.gmra.mxu0 %v340
    %v790 = vpop.f32.mrf.mxu0
    %v791 = vadd.f32 %v721, %v790
    %v792 = vpop.f32.mrf.mxu0
    %793 = vdwg.mxu0
    %794 = vmatprep.subr.mxu0 0.0
    %795 = vmatpush1.msra.mxu0 %v253
    %796 = vmatprep.subr.mxu0 0.0
    %797 = vmatpush1.msra.mxu0 %v252
    %798 = vmatprep.subr.mxu0 0.0
    %799 = vmatpush1.msra.mxu0 %v251
    %800 = vmatprep.subr.mxu0 0.0
    %801 = vmatpush1.msra.mxu0 %v250
    %802 = vmatprep.subr.mxu0 0.0
    %803 = vmatpush1.msra.mxu0 %v249
    %804 = vmatprep.subr.mxu0 0.0
    %805 = vmatpush1.msra.mxu0 %v248
    %806 = vmatprep.subr.mxu0 0.0
    %807 = vmatpush1.msra.mxu0 %v247
    %808 = vmatprep.subr.mxu0 0.0
    %809 = vmatpush1.msra.mxu0 %v246
    %810 = vmatprep.subr.mxu0 0.0
    %811 = vmatpush1.msra.mxu0 %v245
    %812 = vmatprep.subr.mxu0 0.0
    %813 = vmatpush1.msra.mxu0 %v244
    %814 = vmatprep.subr.mxu0 0.0
    %815 = vmatpush1.msra.mxu0 %v243
    %816 = vmatprep.subr.mxu0 0.0
    %817 = vmatpush1.msra.mxu0 %v242
    %818 = vmatprep.subr.mxu0 0.0
    %819 = vmatpush1.msra.mxu0 %v241
    %820 = vmatprep.subr.mxu0 0.0
    %821 = vmatpush1.msra.mxu0 %v240
    %822 = vmatprep.subr.mxu0 0.0
    %823 = vmatpush1.msra.mxu0 %v239
    %824 = vmatprep.subr.mxu0 0.0
    %825 = vmatpush1.msra.mxu0 %v238
    %826 = vmatprep.subr.mxu0 0.0
    %827 = vmatpush2.msra.mxu0 %v269
    %828 = vmatprep.subr.mxu0 0.0
    %829 = vmatpush2.msra.mxu0 %v268
    %830 = vmatprep.subr.mxu0 0.0
    %831 = vmatpush2.msra.mxu0 %v267
    %832 = vmatprep.subr.mxu0 0.0
    %833 = vmatpush2.msra.mxu0 %v266
    %834 = vmatprep.subr.mxu0 0.0
    %835 = vmatpush2.msra.mxu0 %v265
    %836 = vmatprep.subr.mxu0 0.0
    %837 = vmatpush2.msra.mxu0 %v264
    %838 = vmatprep.subr.mxu0 0.0
    %839 = vmatpush2.msra.mxu0 %v263
    %840 = vmatprep.subr.mxu0 0.0
    %841 = vmatpush2.msra.mxu0 %v262
    %842 = vmatprep.subr.mxu0 0.0
    %843 = vmatpush2.msra.mxu0 %v261
    %844 = vmatprep.subr.mxu0 0.0
    %845 = vmatpush2.msra.mxu0 %v260
    %846 = vmatprep.subr.mxu0 0.0
    %847 = vmatpush2.msra.mxu0 %v259
    %848 = vmatprep.subr.mxu0 0.0
    %849 = vmatpush2.msra.mxu0 %v258
    %850 = vmatprep.subr.mxu0 0.0
    %851 = vmatpush2.msra.mxu0 %v257
    %852 = vmatprep.subr.mxu0 0.0
    %853 = vmatpush2.msra.mxu0 %v256
    %854 = vmatprep.subr.mxu0 0.0
    %855 = vmatpush2.msra.mxu0 %v255
    %856 = vmatprep.subr.mxu0 0.0
    %857 = vmatpush2.msra.mxu0 %v254
    %858 = vmatprep.mubr.f32.mxu0 %v358
    %859 = vmatmul.mubr.f32.gmra.mxu0 %v350
    %v860 = vpop.f32.mrf.mxu0
    %v861 = vadd.f32 %v791, %v860
    %v862 = vpop.f32.mrf.mxu0
    %863 = vdwg.mxu0
    %864 = vmatprep.subr.mxu0 0.0
    %865 = vmatpush1.msra.mxu0 %v285
    %866 = vmatprep.subr.mxu0 0.0
    %867 = vmatpush1.msra.mxu0 %v284
    %868 = vmatprep.subr.mxu0 0.0
    %869 = vmatpush1.msra.mxu0 %v283
    %870 = vmatprep.subr.mxu0 0.0
    %871 = vmatpush1.msra.mxu0 %v282
    %872 = vmatprep.subr.mxu0 0.0
    %873 = vmatpush1.msra.mxu0 %v281
    %874 = vmatprep.subr.mxu0 0.0
    %875 = vmatpush1.msra.mxu0 %v280
    %876 = vmatprep.subr.mxu0 0.0
    %877 = vmatpush1.msra.mxu0 %v279
    %878 = vmatprep.subr.mxu0 0.0
    %879 = vmatpush1.msra.mxu0 %v278
    %880 = vmatprep.subr.mxu0 0.0
    %881 = vmatpush1.msra.mxu0 %v277
    %882 = vmatprep.subr.mxu0 0.0
    %883 = vmatpush1.msra.mxu0 %v276
    %884 = vmatprep.subr.mxu0 0.0
    %885 = vmatpush1.msra.mxu0 %v275
    %886 = vmatprep.subr.mxu0 0.0
    %887 = vmatpush1.msra.mxu0 %v274
    %888 = vmatprep.subr.mxu0 0.0
    %889 = vmatpush1.msra.mxu0 %v273
    %890 = vmatprep.subr.mxu0 0.0
    %891 = vmatpush1.msra.mxu0 %v272
    %892 = vmatprep.subr.mxu0 0.0
    %893 = vmatpush1.msra.mxu0 %v271
    %894 = vmatprep.subr.mxu0 0.0
    %895 = vmatpush1.msra.mxu0 %v270
    %896 = vmatprep.subr.mxu0 0.0
    %897 = vmatpush2.msra.mxu0 0.0
    %898 = vmatprep.subr.mxu0 0.0
    %899 = vmatpush2.msra.mxu0 0.0
    %900 = vmatprep.subr.mxu0 0.0
    %901 = vmatpush2.msra.mxu0 0.0
    %902 = vmatprep.subr.mxu0 0.0
    %903 = vmatpush2.msra.mxu0 0.0
    %904 = vmatprep.subr.mxu0 0.0
    %905 = vmatpush2.msra.mxu0 0.0
    %906 = vmatprep.subr.mxu0 0.0
    %907 = vmatpush2.msra.mxu0 0.0
    %908 = vmatprep.subr.mxu0 0.0
    %909 = vmatpush2.msra.mxu0 0.0
    %910 = vmatprep.subr.mxu0 0.0
    %911 = vmatpush2.msra.mxu0 0.0
    %912 = vmatprep.subr.mxu0 0.0
    %913 = vmatpush2.msra.mxu0 0.0
    %914 = vmatprep.subr.mxu0 0.0
    %915 = vmatpush2.msra.mxu0 0.0
    %916 = vmatprep.subr.mxu0 0.0
    %917 = vmatpush2.msra.mxu0 0.0
    %918 = vmatprep.subr.mxu0 0.0
    %919 = vmatpush2.msra.mxu0 0.0
    %920 = vmatprep.subr.mxu0 0.0
    %921 = vmatpush2.msra.mxu0 0.0
    %922 = vmatprep.subr.mxu0 0.0
    %923 = vmatpush2.msra.mxu0 0.0
    %924 = vmatprep.subr.mxu0 0.0
    %925 = vmatpush2.msra.mxu0 0.0
    %926 = vmatprep.subr.mxu0 0.0
    %927 = vmatpush2.msra.mxu0 0.0
    %928 = vmatprep.mubr.f32.mxu0 0.0
    %929 = vmatmul.mubr.f32.gmra.mxu0 %v357
    %v930 = vpop.f32.mrf.mxu0
    %v931 = vadd.f32 %v861, %v930
    %v932 = vpop.f32.mrf.mxu0
    %933 = vdwg.mxu0
    %v934 = vxor.u32 %v931, 2147483648
    %v935 = vmul.f32 %v934, 1.442695
    %v936 = vpow.pop %v935
    %v937 = vadd.f32 %v936, 1.0
    %v938 = vrcp.pop %v937
    %v939 = vmul.f32 1.0, %v938
    %940 = vst [vmem:[#allocation8] sm:$0x3] %v939
    // Predicated region
    $region22: #{tpu_custom_call.1} parent=1 // pred_check
      _
    $region23: #{tpu_custom_call.1} parent=1 // pred_check_branch
      %942 = sbr.rel (0) target = $region25
    $region24: #{tpu_custom_call.1} parent=1 // pred_region
      %s944 = ssub.s32 32, 32
      %945 = vsyncadd [#allocation5], %s944
      %s947 = sshll.u32 [#allocation8], 4
      %s948 = int_to_ptr.vmem [resolvable:$true] %s947
      %950 = dma.vmem_to_hbm [thread:$0]  %s948, 32, %s3, [#allocation5]
    $region25: #{tpu_custom_call.1} parent=1 // pred_fallthru
      _
    // Predicated region
    $region26: #{tpu_custom_call.1} parent=1 // pred_check
      _
    $region27: #{tpu_custom_call.1} parent=1 // pred_check_branch
      %952 = sbr.rel (0) target = $region29
    $region28: #{tpu_custom_call.1} parent=1 // pred_region
      %953 = dma.done [#allocation5], 32
    $region29: #{tpu_custom_call.1} parent=1 // pred_fallthru
      _
    %954 = vsyncpa [#allocation4], 1
    %955 = vsyncpa [#allocation7], 1
    %956 = vsyncpa [#allocation5], 1

</llo_original>
